<compile_context>
chip_gen: v6e
topology: v6e:2x2x1
jax: 0.10.0
libtpu: 0.0.40
codegen_flags: <defaults>
</compile_context>

<pallas_src>
import jax
import jax.numpy as jnp
from jax.experimental import pallas as pl
from jax.experimental.pallas import tpu as pltpu


def _pos_emb_kernel(w_ref, o_ref):
    # w_ref: (tl, d_model) table tile.  o_ref: (tb, tl, d_model) output block.
    # Broadcast along the leading (batch) axis -> wide dense stores, no
    # cross-lane/sublane movement.
    o_ref[...] = jnp.broadcast_to(w_ref[...][None, :, :], o_ref.shape)


def _round_up(x, m):
    return ((x + m - 1) // m) * m


def positional_embedding(x, weight, *, force_kernel=False):
    """Return `weight` broadcast to (batch, max_len, d_model).

    x:      any array whose leading dim is the batch size (values unused,
            matching the PyTorch module).
    weight: (max_len, d_model) embedding table.
    """
    batch = x.shape[0]
    max_len, d_model = weight.shape
    itemsize = jnp.dtype(weight.dtype).itemsize
    out_shape = (batch, max_len, d_model)

    # Physically padded sizes of one (sublane, lane) = (max_len, d_model) slab.
    l_pad = _round_up(max_len, 8)
    d_pad = _round_up(d_model, 128)

    # Small-shape fast path: a pallas_call launch costs more than the copy.
    if not force_kernel and batch * l_pad * d_pad * itemsize < (1 << 20):
        return jnp.broadcast_to(weight[None, :, :], out_shape)

    # Generation-aware output-block budget.
    try:
        kind = jax.devices()[0].device_kind.lower()
    except Exception:  # defensive: fall back to the conservative budget
        kind = ""
    if "v5" in kind:
        block_budget = 3 << 20      # default scoped VMEM is only 16 MiB
    elif "v6" in kind:
        block_budget = 8 << 20      # lots of VMEM; amortize per-step overhead
    else:
        block_budget = 4 << 20      # v7x: 64 MiB/TC shared headroom, 2 cores

    # ---- tile selection (never requires exact divisors) ---------------------
    table_bytes = l_pad * d_pad * itemsize
    if table_bytes <= block_budget or max_len <= 8:
        tl = max_len                                   # full table per block
        tb = max(1, min(batch, block_budget // max(table_bytes, 1)))
    else:
        # Largest multiple-of-8 row count whose padded tile fits the budget.
        tl = max(8, (block_budget // (8 * d_pad * itemsize)) * 8)
        tb = 1

    num_l = pl.cdiv(max_len, tl)
    num_b = pl.cdiv(batch, tb)

    # Ensure megacore (v7x: 2 TCs) has at least 2 parallel blocks to split.
    if num_l * num_b < 2:
        if batch >= 2:
            tb = pl.cdiv(batch, 2)
            num_b = pl.cdiv(batch, tb)
        elif max_len >= 16:
            tl = _round_up(pl.cdiv(max_len, 2), 8)
            num_l = pl.cdiv(max_len, tl)

    # ---- VMEM accounting / compiler params ----------------------------------
    tl_pad = _round_up(tl, 8)
    in_block_bytes = tl_pad * d_pad * itemsize
    out_block_bytes = tb * tl_pad * d_pad * itemsize
    vmem_limit = int(
        min(96 << 20,
            max(32 << 20, 2 * (in_block_bytes + out_block_bytes) + (2 << 20))))

    cost = pl.CostEstimate(
        flops=0,
        transcendentals=0,
        bytes_accessed=(1 + batch) * max_len * d_model * itemsize,
    )

    return pl.pallas_call(
        _pos_emb_kernel,
        out_shape=jax.ShapeDtypeStruct(out_shape, weight.dtype),
        grid_spec=pltpu.PrefetchScalarGridSpec(
            num_scalar_prefetch=0,
            # Table-tile axis leading: weight block index is constant across
            # the inner batch loop, so its HBM re-fetch is elided.
            grid=(num_l, num_b),
            in_specs=[pl.BlockSpec((tl, d_model), lambda l, b: (l, 0))],
            out_specs=pl.BlockSpec((tb, tl, d_model), lambda l, b: (b, l, 0)),
        ),
        compiler_params=pltpu.CompilerParams(
            dimension_semantics=("parallel", "parallel"),
            vmem_limit_bytes=vmem_limit,
        ),
        cost_estimate=cost,
    )(weight)


if __name__ == "__main__":
    key = jax.random.PRNGKey(0)
    k_w, k_x, k_w2, k_x2 = jax.random.split(key, 4)

    # --- Small shapes consistent with the module (forced through the kernel).
    batch, max_len, d_model = 2, 8, 32
    pe_weight = jax.random.normal(k_w, (max_len, d_model), dtype=jnp.float32)
    x = jax.random.randint(k_x, (batch, max_len), 0, max_len, dtype=jnp.int32)

    out = jax.block_until_ready(
        positional_embedding(x, pe_weight, force_kernel=True))
    ref = jnp.broadcast_to(pe_weight[None, :, :], (batch, max_len, d_model))
    assert out.shape == (batch, max_len, d_model), out.shape
    assert out.dtype == jnp.float32
    assert jnp.array_equal(out, ref), "mismatch vs reference (forced kernel)"

    # Default small-shape path (fast path, no Pallas launch).
    out_fast = jax.block_until_ready(positional_embedding(x, pe_weight))
    assert jnp.array_equal(out_fast, ref), "mismatch vs reference (fast path)"

    # --- Moderate shape exercising the tiled Pallas path with non-128 d_model
    # and a non-divisible batch (ragged tiling / masked-lane stores).
    batch2, max_len2, d_model2 = 6, 384, 96
    w2 = jax.random.normal(k_w2, (max_len2, d_model2), dtype=jnp.float32)
    x2 = jax.random.randint(k_x2, (batch2, max_len2), 0, max_len2,
                            dtype=jnp.int32)
    out2 = jax.block_until_ready(positional_embedding(x2, w2))
    ref2 = jnp.broadcast_to(w2[None, :, :], (batch2, max_len2, d_model2))
    assert out2.shape == (batch2, max_len2, d_model2)
    assert jnp.array_equal(out2, ref2), "mismatch vs reference (tiled kernel)"

    print("KERNEL_OK")
</pallas_src>

<mosaic_0001>
module attributes {stable_mosaic.version = 11 : i64} {
  func.func @_pos_emb_kernel(%arg0: i32, %arg1: i32, %arg2: memref<8x32xf32, #tpu.memory_space<vmem>>, %arg3: memref<1x8x32xf32, #tpu.memory_space<vmem>>) attributes {dimension_semantics = [#tpu.dimension_semantics<parallel>, #tpu.dimension_semantics<parallel>], iteration_bounds = array<i64: 1, 2>, scalar_prefetch = 0 : i64, scratch_operands = 0 : i64, tpu.core_type = #tpu.core_type<tc>, window_params = [{transform_indices = @transform_0, window_bounds = array<i64: 8, 32>}, {transform_indices = @transform_1, window_bounds = array<i64: 1, 8, 32>}]} {
    %c0 = arith.constant 0 : index
    %c0_0 = arith.constant 0 : index
    %0 = vector.load %arg2[%c0, %c0_0] : memref<8x32xf32, #tpu.memory_space<vmem>>, vector<8x32xf32>
    %1 = vector.shape_cast %0 : vector<8x32xf32> to vector<1x8x32xf32>
    %c0_1 = arith.constant 0 : index
    %c0_2 = arith.constant 0 : index
    %c0_3 = arith.constant 0 : index
    %2 = vector.load %arg3[%c0_1, %c0_2, %c0_3] : memref<1x8x32xf32, #tpu.memory_space<vmem>>, vector<1x8x32xf32>
    tpu.vector_store %arg3[%c0_1, %c0_2, %c0_3], %1 {strides = array<i32>} : memref<1x8x32xf32, #tpu.memory_space<vmem>>, vector<1x8x32xf32>,
    return
  }
  func.func @transform_0(%arg0: i32, %arg1: i32) -> (i32, i32) {
    %c0_i32 = arith.constant 0 : i32
    %c0_i32_0 = arith.constant 0 : i32
    return %arg0, %c0_i32 : i32, i32
  }
  func.func @transform_1(%arg0: i32, %arg1: i32) -> (i32, i32, i32) {
    %c0_i32 = arith.constant 0 : i32
    %c0_i32_0 = arith.constant 0 : i32
    return %arg1, %arg0, %c0_i32 : i32, i32, i32
  }
}

</mosaic_0001>

<llo_original>
// kernel: tpu_custom_call.1
$region0: #{tpu_custom_call.1}
  #allocation0 [shape = 'u32[]', space=smem, size = 0x4, offset = 0x4, fixed_abs, tag = 'smem constant byte address 0x4 - core index']
  #allocation1 [shape = 'u32[144,128]{1,0:T(1,128)}', space=vmem, size = 0x12000, scoped, tag = 'internal scratch']
  %s0 = inlined_call_operand.hbm [shape: f32[8,32], index: 0, kind: input, shape index: {}]
  %s1 = inlined_call_operand.hbm [shape: f32[2,8,32], index: 1, kind: output, shape index: {}]
  %s2 = sld [smem:[#allocation0]]
  $region41: #{tpu_custom_call.1} parent=0
    _
  %s4 = ssub.s32 1, %s2
  %s5 = scalar_select 0, %s4, %s2
  $region1: #{tpu_custom_call.1} parent=0
    #allocation2 [shape = 'u8[4096]{0}', space=vmem, size = 0x1000, scoped, tag = 'input window, operand 0, single buffered']
    #allocation3 [shape = 's32[2]{0}', space=sflag, size = 0x8, scoped, tag = 'scoped memory for tpu_custom_call.1']
    #allocation4 [shape = 's32[2]{0}', space=sflag, size = 0x8, scoped, tag = 'scoped memory for tpu_custom_call.1']
    #allocation5 [shape = 'u8[8192]{0}', space=vmem, size = 0x2000, scoped, tag = 'output window, operand 0']
    %6 = vsyncpa [#allocation3], 0
    %7 = vsyncpa [#allocation4], 0
    %s8 = scalar_lea.sflag [#allocation4], 1
    %9 = vsyncpa %s8, 0
    loop: start=0, step=1, limit=4
    $region2: #{tpu_custom_call.1} parent=1 // loop_pre_header
      _
    $region3: #{tpu_custom_call.1} parent=1 // loop_header
      %s11 = sphi 0, %s15
      %p12 = scmp.ge.s32.totalorder %s11, 4
      %s18 = sphi 0, %s30
      %s19 = sphi 0, %s26
      %s20 = sphi 0, %s18
      %s21 = sphi 0, %s19
      %s22 = sphi 0, %s20
      %s23 = sphi 0, %s21
      %s33 = sphi 0, %s35
      %s36 = sphi 0, %s33
      %s37 = sphi 0, %s36
      %s53 = sphi 0, %s37
      %s61 = sphi 0, %s63
      %s64 = sphi 0, %s61
      %s65 = sphi 0, %s64
      %s81 = sphi 0, %s65
    $region4: #{tpu_custom_call.1} parent=1 // loop_header_branch
      %14 = sbr.rel (%p12) target = $region8
    $region5: #{tpu_custom_call.1} parent=1 // loop_body
      %s16 = ssub.s32 %s11, 1
      %s17 = ssub.s32 %s11, 2
      %s24 = sadd.s32 1, %s19
      %p25 = scmp.ge.s32.totalorder %s24, 2
      %s26 = scalar_select %p25, 0, %s24
      %s27 = sadd.s32 1, %s18
      %s28 = scalar_select %p25, %s27, %s18
      %p29 = scmp.ge.s32.totalorder %s28, 1
      %s30 = scalar_select %p29, 0, %s28
      %s31 = ssub.s32 %s18, %s30
      %p32 = scmp.eq.s32.totalorder %s31, 0
      %s34 = sadd.s32 %s33, 1
      %s35 = scalar_select %p32, %s33, %s34
      %p38 = pneg %p32
      %p39 = scmp.eq.s32.totalorder %s11, 1
      %p40 = por %p38, %p39
      %p41 = scmp.ne.s32.totalorder %s33, %s36
      %p42 = scmp.eq.s32.totalorder %s11, 0
      %p43 = por %p41, %p42
      %p44 = scmp.ne.s32.totalorder %s33, %s36
      %p45 = scmp.eq.s32.totalorder %s16, 1
      %p46 = por %p44, %p45
      %p47 = scmp.ne.s32.totalorder %s36, %s37
      %p48 = scmp.eq.s32.totalorder %s16, 0
      %p49 = por %p47, %p48
      %p50 = scmp.ne.s32.totalorder %s36, %s37
      %p51 = scmp.eq.s32.totalorder %s17, 1
      %p52 = por %p50, %p51
      %p54 = scmp.ne.s32.totalorder %s37, %s53
      %p55 = scmp.eq.s32.totalorder %s17, 0
      %p56 = por %p54, %p55
      %s57 = ssub.s32 %s19, %s26
      %s58 = ssub.s32 %s18, %s30
      %s59 = sor.u32 %s57, %s58
      %p60 = scmp.eq.s32.totalorder %s59, 0
      %s62 = sadd.s32 %s61, 1
      %s63 = scalar_select %p60, %s61, %s62
      %p66 = pneg %p60
      %p67 = scmp.eq.s32.totalorder %s11, 1
      %p68 = por %p66, %p67
      %p69 = scmp.ne.s32.totalorder %s61, %s64
      %p70 = scmp.eq.s32.totalorder %s11, 0
      %p71 = por %p69, %p70
      %p72 = scmp.ne.s32.totalorder %s61, %s64
      %p73 = scmp.eq.s32.totalorder %s16, 1
      %p74 = por %p72, %p73
      %p75 = scmp.ne.s32.totalorder %s64, %s65
      %p76 = scmp.eq.s32.totalorder %s16, 0
      %p77 = por %p75, %p76
      %p78 = scmp.ne.s32.totalorder %s64, %s65
      %p79 = scmp.eq.s32.totalorder %s17, 1
      %p80 = por %p78, %p79
      %p82 = scmp.ne.s32.totalorder %s65, %s81
      %p83 = scmp.eq.s32.totalorder %s17, 0
      %p84 = por %p82, %p83
      %p85 = scmp.le.s32.totalorder 1, %s11
      %p86 = scmp.lt.s32.totalorder %s11, 3
      %p87 = pnand %p85, %p86
      %p88 = pneg %p87
      // Predicated region
      $region9: #{tpu_custom_call.1} parent=5 // pred_check
        _
      $region10: #{tpu_custom_call.1} parent=5 // pred_check_branch
        %90 = sbr.rel (%p87) target = $region12
      $region11: #{tpu_custom_call.1} parent=5 // pred_region
        %s91 = ssub.s32 %s11, 1
        // Predicated region
        $region13: #{tpu_custom_call.1} parent=11 // pred_check
          %p92 = pneg %p49
        $region14: #{tpu_custom_call.1} parent=11 // pred_check_branch
          %94 = sbr.rel (%p92) target = $region16
        $region15: #{tpu_custom_call.1} parent=11 // pred_region
          %s96 = ssub.s32 128, 128
          %97 = vsyncadd [#allocation3], %s96
          %s98 = smul.addr %s20, 128
          %s99 = scalar_lea.hbm %s0, %s98
          %s101 = sshll.u32 [#allocation2], 4
          %s102 = int_to_ptr.vmem [resolvable:$true] %s101
          %104 = dma.hbm_to_vmem [thread:$0]  %s99, 128, %s102, [#allocation3]
        $region16: #{tpu_custom_call.1} parent=11 // pred_fallthru
          _
      $region12: #{tpu_custom_call.1} parent=5 // pred_fallthru
        _
      %p105 = scmp.lt.s32.totalorder %s11, 2
      // Predicated region
      $region17: #{tpu_custom_call.1} parent=5 // pred_check
        %p106 = pneg %p105
      $region18: #{tpu_custom_call.1} parent=5 // pred_check_branch
        %108 = sbr.rel (%p106) target = $region20
      $region19: #{tpu_custom_call.1} parent=5 // pred_region
        _
      $region20: #{tpu_custom_call.1} parent=5 // pred_fallthru
        _
      %p109 = scmp.le.s32.totalorder 1, %s11
      %p110 = scmp.lt.s32.totalorder %s11, 3
      %p111 = pnand %p109, %p110
      %p112 = pneg %p111
      // Predicated region
      $region21: #{tpu_custom_call.1} parent=5 // pred_check
        _
      $region22: #{tpu_custom_call.1} parent=5 // pred_check_branch
        %114 = sbr.rel (%p111) target = $region24
      $region23: #{tpu_custom_call.1} parent=5 // pred_region
        %s115 = ssub.s32 %s11, 1
        // Predicated region
        $region25: #{tpu_custom_call.1} parent=23 // pred_check
          %p116 = pneg %p49
        $region26: #{tpu_custom_call.1} parent=23 // pred_check_branch
          %118 = sbr.rel (%p116) target = $region28
        $region27: #{tpu_custom_call.1} parent=23 // pred_region
          %119 = dma.done [#allocation3], 128
        $region28: #{tpu_custom_call.1} parent=23 // pred_fallthru
          _
        %p120 = pneg %p49
        %p121 = pneg %p46
        %p122 = pneg %p77
        %p123 = pneg %p74
        %s124 = sand.u32 %s64, 1
        %s125 = scalar_lea.sflag [#allocation4], %s124
        %s126 = sand.u32 %s64, 1
        %s127 = smul.addr %s126, 8
        %s128 = scalar_lea.vmem [#allocation5], %s127
        %v129 = vld [vmem:[#allocation2] sm:$0xff]
        %vm130 = vcmask 261120
        %131 = vst.msk [vmem:[%s128] sm:$0xff] %vm130, %v129
        %s132 = sand.u32 %s64, 1
        %s133 = scalar_lea.sflag [#allocation4], %s132
        %s134 = sand.u32 %s64, 1
        %s135 = smul.addr %s134, 8
        %s136 = scalar_lea.vmem [#allocation5], %s135
        // Predicated region
        $region29: #{tpu_custom_call.1} parent=23 // pred_check
          %p137 = pneg %p74
        $region30: #{tpu_custom_call.1} parent=23 // pred_check_branch
          %139 = sbr.rel (%p137) target = $region32
        $region31: #{tpu_custom_call.1} parent=23 // pred_region
          %s141 = ssub.s32 128, 128
          %142 = vsyncadd %s133, %s141
          %s143 = sadd.s32 %s20, %s21
          %s144 = smul.addr %s143, 128
          %s145 = scalar_lea.hbm %s1, %s144
          %s147 = sshll.u32 %s136, 4
          %s148 = int_to_ptr.vmem [resolvable:$true] %s147
          %150 = dma.vmem_to_hbm [thread:$0]  %s148, 128, %s145, %s133
        $region32: #{tpu_custom_call.1} parent=23 // pred_fallthru
          _
      $region24: #{tpu_custom_call.1} parent=5 // pred_fallthru
        _
      %p151 = scmp.le.s32.totalorder 2, %s11
      // Predicated region
      $region33: #{tpu_custom_call.1} parent=5 // pred_check
        %p152 = pneg %p151
      $region34: #{tpu_custom_call.1} parent=5 // pred_check_branch
        %154 = sbr.rel (%p152) target = $region36
      $region35: #{tpu_custom_call.1} parent=5 // pred_region
        %s155 = ssub.s32 %s11, 2
        // Predicated region
        $region37: #{tpu_custom_call.1} parent=35 // pred_check
          %p156 = pneg %p80
        $region38: #{tpu_custom_call.1} parent=35 // pred_check_branch
          %158 = sbr.rel (%p156) target = $region40
        $region39: #{tpu_custom_call.1} parent=35 // pred_region
          %s159 = sand.u32 %s65, 1
          %s160 = scalar_lea.sflag [#allocation4], %s159
          %s161 = sand.u32 %s65, 1
          %s162 = smul.addr %s161, 8
          %s163 = scalar_lea.vmem [#allocation5], %s162
          %164 = dma.done %s160, 128
        $region40: #{tpu_custom_call.1} parent=35 // pred_fallthru
          _
      $region36: #{tpu_custom_call.1} parent=5 // pred_fallthru
        _
    $region6: #{tpu_custom_call.1} parent=1 // loop_footer
      %s15 = sadd.s32 1, %s11
    $region7: #{tpu_custom_call.1} parent=1 // loop_footer_branch
      %10 = sbr.rel target = $region3
    $region8: #{tpu_custom_call.1} parent=1 // loop_exit
      _
    %165 = vsyncpa [#allocation3], 1
    %s166 = scalar_lea.sflag [#allocation3], 1
    %167 = vsyncpa %s166, 1
    %168 = vsyncpa [#allocation4], 1
    %s169 = scalar_lea.sflag [#allocation4], 1
    %170 = vsyncpa %s169, 1

</llo_original>
